<compile_context>
chip_gen: v7x
topology: tpu7x:2x2x1
jax: 0.10.0
libtpu: 0.0.40
codegen_flags: <defaults>
</compile_context>

<pallas_src>
import functools

import jax
import jax.numpy as jnp
from jax.experimental import pallas as pl
from jax.experimental.pallas import tpu as pltpu


def _round_up(n, m):
    return (n + m - 1) // m * m


# --------------------------------------------------------------------------
# Fused kernel: conv-as-matmul + ReLU -> fc1 + ReLU -> fc2 + ReLU -> output.
# Weight refs are whole-array resident VMEM blocks; static ref slices below
# are zero-cost views into the two packed weight buffers.
# --------------------------------------------------------------------------
def _fused_forward_kernel(x_ref, wa_ref, wb_ref, o_ref, *, CL, H, P,
                          o_bc, o_b1, o_w2, o_b2, o_wo, o_bo):
    x = x_ref[...]                                            # (TB, CL)
    # conv1 (Toeplitz matmul; columns already in PyTorch flatten order o*L+l)
    h = jnp.dot(x, wa_ref[0:CL, :], preferred_element_type=jnp.float32)
    h = jnp.maximum(h + wa_ref[o_bc:o_bc + 1, :], 0.0)        # (TB, H) lane-dense
    # dropout(p=0.1): identity at inference time.
    h = jnp.dot(h, wb_ref[0:H, :], preferred_element_type=jnp.float32)
    h = jnp.maximum(h + wb_ref[o_b1:o_b1 + 1, :], 0.0)        # (TB, P)
    # dropout(p=0.1): identity at inference time.
    h = jnp.dot(h, wb_ref[o_w2:o_w2 + P, :], preferred_element_type=jnp.float32)
    h = jnp.maximum(h + wb_ref[o_b2:o_b2 + 1, :], 0.0)        # (TB, P)
    o = jnp.dot(h, wb_ref[o_wo:o_wo + P, :], preferred_element_type=jnp.float32)
    o_ref[...] = o + wb_ref[o_bo:o_bo + 1, :]                 # (TB, P) unmasked store


def forward(kparams, x):
    """x: (B, C_in, L) float32 (PyTorch NCL convention). Returns (B, num_classes)."""
    B, C, L = x.shape
    CL, H, P = kparams["CL"], kparams["H"], kparams["P"]
    assert C * L == CL
    num_classes = kparams["num_classes"]

    # Batch tile: fill the MXU M dimension when a real batch is given,
    # minimal 8-row tile for tiny batches.
    tb = 256 if B >= 256 else (128 if B >= 128 else _round_up(max(B, 8), 8))
    B_pad = _round_up(B, tb)

    # Free view of the contiguous NCL tensor: xflat[b, c*L + m] = x[b, c, m].
    xflat = x.reshape(B, CL)
    if B_pad != B:
        xflat = jnp.pad(xflat, ((0, B_pad - B), (0, 0)))

    wa, wb = kparams["wa"], kparams["wb"]
    kernel = functools.partial(
        _fused_forward_kernel, CL=CL, H=H, P=P,
        o_bc=kparams["o_bc"], o_b1=kparams["o_b1"], o_w2=kparams["o_w2"],
        o_b2=kparams["o_b2"], o_wo=kparams["o_wo"], o_bo=kparams["o_bo"])

    flops = 2 * B_pad * (CL * H + H * P + P * P + P * P)
    bytes_accessed = 4 * (B_pad * CL + wa.size + wb.size + B_pad * P)

    out = pl.pallas_call(
        kernel,
        out_shape=jax.ShapeDtypeStruct((B_pad, P), jnp.float32),
        grid_spec=pltpu.PrefetchScalarGridSpec(
            num_scalar_prefetch=0,
            grid=(B_pad // tb,),
            in_specs=[
                pl.BlockSpec((tb, CL), lambda i: (i, 0)),      # x tile streams
                pl.BlockSpec(wa.shape, lambda i: (0, 0)),      # weights resident
                pl.BlockSpec(wb.shape, lambda i: (0, 0)),      # weights resident
            ],
            out_specs=pl.BlockSpec((tb, P), lambda i: (i, 0)),
        ),
        compiler_params=pltpu.CompilerParams(
            dimension_semantics=("parallel",)),                # v7x: 2 TCs split batch
        cost_estimate=pl.CostEstimate(
            flops=flops, transcendentals=0, bytes_accessed=bytes_accessed),
    )(xflat, wa, wb)
    return out[:B, :num_classes]


# --------------------------------------------------------------------------
# Parameter handling.
# --------------------------------------------------------------------------
def init_torch_params(key, input_features, sequence_length, num_classes):
    """Deterministic init mimicking PyTorch uniform(-1/sqrt(fan_in), ...),
    stored in PyTorch layouts."""
    C, L = input_features, sequence_length
    ks = jax.random.split(key, 8)

    def u(k, shape, fan_in):
        bound = 1.0 / float(fan_in) ** 0.5
        return jax.random.uniform(k, shape, jnp.float32, -bound, bound)

    return {
        "conv_w": u(ks[0], (32, C, 3), C * 3),       # (out, in, k)
        "conv_b": u(ks[1], (32,), C * 3),
        "fc1_w": u(ks[2], (50, 32 * L), 32 * L),
        "fc1_b": u(ks[3], (50,), 32 * L),
        "fc2_w": u(ks[4], (50, 50), 50),
        "fc2_b": u(ks[5], (50,), 50),
        "out_w": u(ks[6], (num_classes, 50), 50),
        "out_b": u(ks[7], (num_classes,), 50),
    }


def to_kernel_params(p, sequence_length, num_classes):
    """One-time weight re-layout:
      * Conv1d(k=3, stride=1, padding=1) folded into a dense matrix
          Wconv[c*L + m, o*L + l] = conv_w[o, c, m - l + 1]  (0 outside taps)
        so relu(x.reshape(B, C*L) @ Wconv + bconv) == PyTorch relu(conv1(x)).view(B,-1).
      * fc1/fc2/output transposed and zero-padded to lane-dense width P=128.
      * Everything packed into two contiguous buffers (3 DMA descriptors/call).
    """
    wc_t = p["conv_w"]                               # (O, C, K)
    O, C, K = wc_t.shape
    L = sequence_length
    CL, H, P = C * L, O * L, 128
    assert num_classes <= P and 50 <= P

    # ---- Toeplitz fold of the conv -------------------------------------
    m = jnp.arange(L)[:, None]                       # input position
    l = jnp.arange(L)[None, :]                       # output position
    k = m - l + 1                                    # tap index (padding=1)
    valid = ((k >= 0) & (k < K)).astype(wc_t.dtype)  # (L, L)
    kc = jnp.clip(k, 0, K - 1)
    wck = jnp.transpose(wc_t, (1, 2, 0))             # (C, K, O)
    blk = wck[:, kc, :] * valid[None, :, :, None]    # (C, L, L, O) : [c,m,l,o]
    wconv = jnp.transpose(blk, (0, 1, 3, 2)).reshape(CL, H)
    bconv = jnp.repeat(p["conv_b"], L).reshape(1, H)     # col o*L+l -> b[o]

    # ---- fc layers, zero-padded to P=128 lanes (exact on real lanes) ----
    w1 = jnp.zeros((H, P), jnp.float32).at[:, :50].set(p["fc1_w"].T)
    b1 = jnp.zeros((1, P), jnp.float32).at[:, :50].set(p["fc1_b"])
    w2 = jnp.zeros((P, P), jnp.float32).at[:50, :50].set(p["fc2_w"].T)
    b2 = jnp.zeros((1, P), jnp.float32).at[:, :50].set(p["fc2_b"])
    wo = jnp.zeros((P, P), jnp.float32).at[:50, :num_classes].set(p["out_w"].T)
    bo = jnp.zeros((1, P), jnp.float32).at[:, :num_classes].set(p["out_b"])

    # ---- pack into two contiguous buffers (sublane-aligned offsets) -----
    o_bc = _round_up(CL, 8)
    a_rows = _round_up(o_bc + 1, 8)
    wa = jnp.zeros((a_rows, H), jnp.float32)
    wa = wa.at[0:CL, :].set(wconv).at[o_bc, :].set(bconv[0])

    o_b1 = _round_up(H, 8)
    o_w2 = _round_up(o_b1 + 1, 8)
    o_b2 = _round_up(o_w2 + P, 8)
    o_wo = _round_up(o_b2 + 1, 8)
    o_bo = _round_up(o_wo + P, 8)
    b_rows = _round_up(o_bo + 1, 8)
    wb = jnp.zeros((b_rows, P), jnp.float32)
    wb = (wb.at[0:H, :].set(w1)
            .at[o_b1, :].set(b1[0])
            .at[o_w2:o_w2 + P, :].set(w2)
            .at[o_b2, :].set(b2[0])
            .at[o_wo:o_wo + P, :].set(wo)
            .at[o_bo, :].set(bo[0]))

    return {"wa": wa, "wb": wb, "CL": CL, "H": H, "P": P,
            "num_classes": num_classes,
            "o_bc": o_bc, "o_b1": o_b1, "o_w2": o_w2,
            "o_b2": o_b2, "o_wo": o_wo, "o_bo": o_bo}


# --------------------------------------------------------------------------
# Pure-JAX reference mirroring the PyTorch module (eval mode).
# --------------------------------------------------------------------------
def reference(p, x):
    B, C, L = x.shape
    hp = jax.lax.Precision.HIGHEST
    xp = jnp.pad(x, ((0, 0), (0, 0), (1, 1)))        # (B, C, L+2)
    y = jnp.zeros((B, 32, L), jnp.float32)
    for k in range(3):
        y = y + jnp.einsum("oc,bcl->bol", p["conv_w"][:, :, k],
                           xp[:, :, k:k + L], precision=hp)
    y = jnp.maximum(y + p["conv_b"][None, :, None], 0.0)
    flat = y.reshape(B, 32 * L)                      # PyTorch x.view(B, -1)
    h = jnp.maximum(jnp.dot(flat, p["fc1_w"].T, precision=hp) + p["fc1_b"], 0.0)
    h = jnp.maximum(jnp.dot(h, p["fc2_w"].T, precision=hp) + p["fc2_b"], 0.0)
    return jnp.dot(h, p["out_w"].T, precision=hp) + p["out_b"]


if __name__ == "__main__":
    B, C_IN, SEQ_LEN, NUM_CLASSES = 2, 4, 16, 5

    key = jax.random.PRNGKey(0)
    pkey, xkey, xkey2 = jax.random.split(key, 3)
    tparams = init_torch_params(pkey, C_IN, SEQ_LEN, NUM_CLASSES)
    kparams = to_kernel_params(tparams, SEQ_LEN, NUM_CLASSES)

    # Small-shape check (B=2): single grid step.
    x = jax.random.normal(xkey, (B, C_IN, SEQ_LEN), jnp.float32)   # NCL input
    out = jax.block_until_ready(forward(kparams, x))
    ref = reference(tparams, x)
    assert out.shape == (B, NUM_CLASSES), out.shape
    assert jnp.allclose(out, ref, atol=1e-3, rtol=1e-3), (out, ref)

    # Batched check: exercises the batch grid (TB=256, padding, "parallel"
    # semantics so v7x's two TensorCores each take half the tiles).
    BB = 300
    xb = jax.random.normal(xkey2, (BB, C_IN, SEQ_LEN), jnp.float32)
    outb = jax.block_until_ready(forward(kparams, xb))
    refb = reference(tparams, xb)
    assert outb.shape == (BB, NUM_CLASSES), outb.shape
    assert jnp.allclose(outb, refb, atol=1e-3, rtol=1e-3)

    print("KERNEL_OK")
</pallas_src>

<mosaic_0001>
module attributes {stable_mosaic.version = 11 : i64} {
  func.func @_fused_forward_kernel(%arg0: i32, %arg1: memref<8x64xf32, #tpu.memory_space<vmem>>, %arg2: memref<72x512xf32, #tpu.memory_space<vmem>>, %arg3: memref<792x128xf32, #tpu.memory_space<vmem>>, %arg4: memref<8x128xf32, #tpu.memory_space<vmem>>) attributes {dimension_semantics = [#tpu.dimension_semantics<parallel>], iteration_bounds = array<i64: 1>, scalar_prefetch = 0 : i64, scratch_operands = 0 : i64, tpu.core_type = #tpu.core_type<tc>, window_params = [{transform_indices = @transform_0, window_bounds = array<i64: 8, 64>}, {pipeline_mode = #tpu.pipeline_mode<synchronous>, transform_indices = @transform_1, window_bounds = array<i64: 72, 512>}, {pipeline_mode = #tpu.pipeline_mode<synchronous>, transform_indices = @transform_2, window_bounds = array<i64: 792, 128>}, {transform_indices = @transform_3, window_bounds = array<i64: 8, 128>}]} {
    %c0 = arith.constant 0 : index
    %c0_0 = arith.constant 0 : index
    %0 = vector.load %arg1[%c0, %c0_0] : memref<8x64xf32, #tpu.memory_space<vmem>>, vector<8x64xf32>
    %c0_1 = arith.constant 0 : index
    %c0_2 = arith.constant 0 : index
    %1 = vector.load %arg2[%c0_1, %c0_2] : memref<72x512xf32, #tpu.memory_space<vmem>>, vector<64x512xf32>
    %cst = arith.constant dense<0.000000e+00> : vector<8x512xf32>
    %2 = tpu.matmul %0, %1, %cst {dimension_numbers = #tpu.dot_dimension_numbers<[1], [0], [0], [1], [0, 0, 1, 1], [], []>} : vector<8x64xf32>, vector<64x512xf32>, vector<8x512xf32> -> vector<8x512xf32>
    %c64 = arith.constant 64 : index
    %c0_3 = arith.constant 0 : index
    %3 = vector.load %arg2[%c64, %c0_3] : memref<72x512xf32, #tpu.memory_space<vmem>>, vector<1x512xf32>
    %4 = vector.broadcast %3 : vector<1x512xf32> to vector<8x512xf32>
    %5 = arith.addf %2, %4 : vector<8x512xf32>
    %cst_4 = arith.constant 0.000000e+00 : f32
    %6 = vector.broadcast %cst_4 : f32 to vector<8x512xf32>
    %7 = arith.maximumf %5, %6 : vector<8x512xf32>
    %c0_5 = arith.constant 0 : index
    %c0_6 = arith.constant 0 : index
    %8 = vector.load %arg3[%c0_5, %c0_6] : memref<792x128xf32, #tpu.memory_space<vmem>>, vector<512x128xf32>
    %cst_7 = arith.constant dense<0.000000e+00> : vector<8x128xf32>
    %9 = tpu.matmul %7, %8, %cst_7 {dimension_numbers = #tpu.dot_dimension_numbers<[1], [0], [0], [1], [0, 0, 1, 1], [], []>} : vector<8x512xf32>, vector<512x128xf32>, vector<8x128xf32> -> vector<8x128xf32>
    %c512 = arith.constant 512 : index
    %c0_8 = arith.constant 0 : index
    %10 = vector.load %arg3[%c512, %c0_8] : memref<792x128xf32, #tpu.memory_space<vmem>>, vector<1x128xf32>
    %11 = vector.broadcast %10 : vector<1x128xf32> to vector<8x128xf32>
    %12 = arith.addf %9, %11 : vector<8x128xf32>
    %cst_9 = arith.constant 0.000000e+00 : f32
    %13 = vector.broadcast %cst_9 : f32 to vector<8x128xf32>
    %14 = arith.maximumf %12, %13 : vector<8x128xf32>
    %c520 = arith.constant 520 : index
    %c0_10 = arith.constant 0 : index
    %15 = vector.load %arg3[%c520, %c0_10] : memref<792x128xf32, #tpu.memory_space<vmem>>, vector<128x128xf32>
    %cst_11 = arith.constant dense<0.000000e+00> : vector<8x128xf32>
    %16 = tpu.matmul %14, %15, %cst_11 {dimension_numbers = #tpu.dot_dimension_numbers<[1], [0], [0], [1], [0, 0, 1, 1], [], []>} : vector<8x128xf32>, vector<128x128xf32>, vector<8x128xf32> -> vector<8x128xf32>
    %c648 = arith.constant 648 : index
    %c0_12 = arith.constant 0 : index
    %17 = vector.load %arg3[%c648, %c0_12] : memref<792x128xf32, #tpu.memory_space<vmem>>, vector<1x128xf32>
    %18 = vector.broadcast %17 : vector<1x128xf32> to vector<8x128xf32>
    %19 = arith.addf %16, %18 : vector<8x128xf32>
    %cst_13 = arith.constant 0.000000e+00 : f32
    %20 = vector.broadcast %cst_13 : f32 to vector<8x128xf32>
    %21 = arith.maximumf %19, %20 : vector<8x128xf32>
    %c656 = arith.constant 656 : index
    %c0_14 = arith.constant 0 : index
    %22 = vector.load %arg3[%c656, %c0_14] : memref<792x128xf32, #tpu.memory_space<vmem>>, vector<128x128xf32>
    %cst_15 = arith.constant dense<0.000000e+00> : vector<8x128xf32>
    %23 = tpu.matmul %21, %22, %cst_15 {dimension_numbers = #tpu.dot_dimension_numbers<[1], [0], [0], [1], [0, 0, 1, 1], [], []>} : vector<8x128xf32>, vector<128x128xf32>, vector<8x128xf32> -> vector<8x128xf32>
    %c784 = arith.constant 784 : index
    %c0_16 = arith.constant 0 : index
    %24 = vector.load %arg3[%c784, %c0_16] : memref<792x128xf32, #tpu.memory_space<vmem>>, vector<1x128xf32>
    %25 = vector.broadcast %24 : vector<1x128xf32> to vector<8x128xf32>
    %26 = arith.addf %23, %25 : vector<8x128xf32>
    %c0_17 = arith.constant 0 : index
    %c0_18 = arith.constant 0 : index
    %27 = vector.load %arg4[%c0_17, %c0_18] : memref<8x128xf32, #tpu.memory_space<vmem>>, vector<8x128xf32>
    tpu.vector_store %arg4[%c0_17, %c0_18], %26 {strides = array<i32>} : memref<8x128xf32, #tpu.memory_space<vmem>>, vector<8x128xf32>,
    return
  }
  func.func @transform_0(%arg0: i32) -> (i32, i32) {
    %c0_i32 = arith.constant 0 : i32
    %c0_i32_0 = arith.constant 0 : i32
    return %arg0, %c0_i32 : i32, i32
  }
  func.func @transform_1(%arg0: i32) -> (i32, i32) {
    %c0_i32 = arith.constant 0 : i32
    %c0_i32_0 = arith.constant 0 : i32
    %c0_i32_1 = arith.constant 0 : i32
    return %c0_i32, %c0_i32_0 : i32, i32
  }
  func.func @transform_2(%arg0: i32) -> (i32, i32) {
    %c0_i32 = arith.constant 0 : i32
    %c0_i32_0 = arith.constant 0 : i32
    %c0_i32_1 = arith.constant 0 : i32
    return %c0_i32, %c0_i32_0 : i32, i32
  }
  func.func @transform_3(%arg0: i32) -> (i32, i32) {
    %c0_i32 = arith.constant 0 : i32
    %c0_i32_0 = arith.constant 0 : i32
    return %arg0, %c0_i32 : i32, i32
  }
}

</mosaic_0001>

<llo_original>
// kernel: tpu_custom_call.1
$region0: #{tpu_custom_call.1}
  #allocation0 [shape = 'u32[]', space=smem, size = 0x4, offset = 0x4, fixed_abs, tag = 'smem constant byte address 0x4 - core index']
  #allocation1 [shape = 'u32[144,128]{1,0:T(1,128)}', space=vmem, size = 0x12000, scoped, tag = 'internal scratch']
  %s0 = inlined_call_operand.hbm [shape: f32[8,64], index: 0, kind: input, shape index: {}]
  %s1 = inlined_call_operand.hbm [shape: f32[72,512], index: 1, kind: input, shape index: {}]
  %s2 = inlined_call_operand.hbm [shape: f32[792,128], index: 2, kind: input, shape index: {}]
  %s3 = inlined_call_operand.hbm [shape: f32[8,128], index: 3, kind: output, shape index: {}]
  %s4 = sld [smem:[#allocation0]]
  $region34: #{tpu_custom_call.1} parent=0
    _
  %s6 = ssub.s32 1, %s4
  %s7 = scalar_select 0, %s6, %s4
  $region1: #{tpu_custom_call.1} parent=0
    #allocation2 [shape = 'u8[4096]{0}', space=vmem, size = 0x1000, scoped, tag = 'input window, operand 0, single buffered']
    #allocation3 [shape = 's32[1]{0}', space=sflag, size = 0x4, scoped, tag = 'scoped memory for tpu_custom_call.1']
    #allocation4 [shape = 's32[1]{0}', space=sflag, size = 0x4, scoped, tag = 'scoped memory for tpu_custom_call.1']
    #allocation5 [shape = 'u8[147456]{0}', space=vmem, size = 0x24000, scoped, tag = 'input window, operand 1, single buffered']
    #allocation6 [shape = 's32[1]{0}', space=sflag, size = 0x4, scoped, tag = 'scoped memory for tpu_custom_call.1']
    #allocation7 [shape = 'u8[405504]{0}', space=vmem, size = 0x63000, scoped, tag = 'input window, operand 2, single buffered']
    #allocation8 [shape = 'u8[4096]{0}', space=vmem, size = 0x1000, scoped, tag = 'output window, operand 0, single buffered']
    %8 = vsyncpa [#allocation3], 0
    %9 = vsyncpa [#allocation6], 0
    %10 = vsyncpa [#allocation4], 0
    // Predicated region
    $region2: #{tpu_custom_call.1} parent=1 // pred_check
      _
    $region3: #{tpu_custom_call.1} parent=1 // pred_check_branch
      %12 = sbr.rel (0) target = $region5
    $region4: #{tpu_custom_call.1} parent=1 // pred_region
      %s14 = ssub.s32 128, 128
      %15 = vsyncadd [#allocation3], %s14
      %s17 = sshll.u32 [#allocation2], 4
      %s18 = int_to_ptr.vmem [resolvable:$true] %s17
      %20 = dma.hbm_to_vmem [thread:$0]  %s0, 128, %s18, [#allocation3]
    $region5: #{tpu_custom_call.1} parent=1 // pred_fallthru
      _
    // Predicated region
    $region6: #{tpu_custom_call.1} parent=1 // pred_check
      _
    $region7: #{tpu_custom_call.1} parent=1 // pred_check_branch
      %22 = sbr.rel (0) target = $region9
    $region8: #{tpu_custom_call.1} parent=1 // pred_region
      %s24 = ssub.s32 4608, 4608
      %25 = vsyncadd [#allocation6], %s24
      %s26 = sshll.u32 [#allocation5], 4
      %s27 = int_to_ptr.vmem [resolvable:$true] %s26
      %32 = dma.hbm_to_vmem [thread:$0]  %s1, 4608, %s27, [#allocation6], 512, 512, 32
    $region9: #{tpu_custom_call.1} parent=1 // pred_fallthru
      _
    // Predicated region
    $region10: #{tpu_custom_call.1} parent=1 // pred_check
      _
    $region11: #{tpu_custom_call.1} parent=1 // pred_check_branch
      %34 = sbr.rel (0) target = $region13
    $region12: #{tpu_custom_call.1} parent=1 // pred_region
      %s36 = ssub.s32 12672, 12672
      %37 = vsyncadd [#allocation6], %s36
      %s38 = sshll.u32 [#allocation7], 4
      %s39 = int_to_ptr.vmem [resolvable:$true] %s38
      %44 = dma.hbm_to_vmem [thread:$0]  %s2, 12672, %s39, [#allocation6], 128, 128, 8
    $region13: #{tpu_custom_call.1} parent=1 // pred_fallthru
      _
    // Predicated region
    $region14: #{tpu_custom_call.1} parent=1 // pred_check
      _
    $region15: #{tpu_custom_call.1} parent=1 // pred_check_branch
      %46 = sbr.rel (0) target = $region17
    $region16: #{tpu_custom_call.1} parent=1 // pred_region
      %47 = dma.done [#allocation3], 128
    $region17: #{tpu_custom_call.1} parent=1 // pred_fallthru
      _
    // Predicated region
    $region18: #{tpu_custom_call.1} parent=1 // pred_check
      _
    $region19: #{tpu_custom_call.1} parent=1 // pred_check_branch
      %49 = sbr.rel (0) target = $region21
    $region20: #{tpu_custom_call.1} parent=1 // pred_region
      %50 = dma.done [#allocation6], 4608
    $region21: #{tpu_custom_call.1} parent=1 // pred_fallthru
      _
    // Predicated region
    $region22: #{tpu_custom_call.1} parent=1 // pred_check
      _
    $region23: #{tpu_custom_call.1} parent=1 // pred_check_branch
      %52 = sbr.rel (0) target = $region25
    $region24: #{tpu_custom_call.1} parent=1 // pred_region
      %53 = dma.done [#allocation6], 12672
    $region25: #{tpu_custom_call.1} parent=1 // pred_fallthru
      _
    %v54 = vld [vmem:[#allocation2] sm:$0xff]
    %v55 = vld [vmem:[#allocation5] sm:$0xff]
    %v56 = vld [vmem:[#allocation5 + $0x8] sm:$0xff]
    %v57 = vld [vmem:[#allocation5 + $0x10] sm:$0xff]
    %v58 = vld [vmem:[#allocation5 + $0x18] sm:$0xff]
    %v59 = vld [vmem:[#allocation5 + $0x20] sm:$0xff]
    %v60 = vld [vmem:[#allocation5 + $0x28] sm:$0xff]
    %v61 = vld [vmem:[#allocation5 + $0x30] sm:$0xff]
    %v62 = vld [vmem:[#allocation5 + $0x38] sm:$0xff]
    %v63 = vld [vmem:[#allocation5 + $0x40] sm:$0xff]
    %v64 = vld [vmem:[#allocation5 + $0x48] sm:$0xff]
    %v65 = vld [vmem:[#allocation5 + $0x50] sm:$0xff]
    %v66 = vld [vmem:[#allocation5 + $0x58] sm:$0xff]
    %v67 = vld [vmem:[#allocation5 + $0x60] sm:$0xff]
    %v68 = vld [vmem:[#allocation5 + $0x68] sm:$0xff]
    %v69 = vld [vmem:[#allocation5 + $0x70] sm:$0xff]
    %v70 = vld [vmem:[#allocation5 + $0x78] sm:$0xff]
    %v71 = vld [vmem:[#allocation5 + $0x80] sm:$0xff]
    %v72 = vld [vmem:[#allocation5 + $0x88] sm:$0xff]
    %v73 = vld [vmem:[#allocation5 + $0x90] sm:$0xff]
    %v74 = vld [vmem:[#allocation5 + $0x98] sm:$0xff]
    %v75 = vld [vmem:[#allocation5 + $0xa0] sm:$0xff]
    %v76 = vld [vmem:[#allocation5 + $0xa8] sm:$0xff]
    %v77 = vld [vmem:[#allocation5 + $0xb0] sm:$0xff]
    %v78 = vld [vmem:[#allocation5 + $0xb8] sm:$0xff]
    %v79 = vld [vmem:[#allocation5 + $0xc0] sm:$0xff]
    %v80 = vld [vmem:[#allocation5 + $0xc8] sm:$0xff]
    %v81 = vld [vmem:[#allocation5 + $0xd0] sm:$0xff]
    %v82 = vld [vmem:[#allocation5 + $0xd8] sm:$0xff]
    %v83 = vld [vmem:[#allocation5 + $0xe0] sm:$0xff]
    %v84 = vld [vmem:[#allocation5 + $0xe8] sm:$0xff]
    %v85 = vld [vmem:[#allocation5 + $0xf0] sm:$0xff]
    %v86 = vld [vmem:[#allocation5 + $0xf8] sm:$0xff]
    %s87 = scalar_lea.vmem [#allocation5], 256
    %v88 = vld [vmem:[%s87] ss:$8 sm:$0xf]
    %v90 = vlaneseq
    %v91 = vshrl.u32 %v90, 7
    %v92 = vsub.s32 0, %v91
    %v93 = vrot.slane %v88, %v92
    %v94 = vlaneseq
    %v95 = vshrl.u32 %v94, 7
    %v96 = vsub.s32 1, %v95
    %v97 = vrot.slane %v88, %v96
    %v98 = vlaneseq
    %v99 = vshrl.u32 %v98, 7
    %v100 = vsub.s32 2, %v99
    %v101 = vrot.slane %v88, %v100
    %v102 = vlaneseq
    %v103 = vshrl.u32 %v102, 7
    %v104 = vsub.s32 3, %v103
    %v105 = vrot.slane %v88, %v104
    %vm110 = vcmask 523264
    %v112 = vsel %vm110, %v54, 0
    %114 = vmatprep.subr.mxu0 %v56
    %115 = vmatpush1.msra.mxu0 %v55
    %116 = vmatprep.subr.mxu0 %v60
    %117 = vmatpush1.msra.mxu0 %v59
    %118 = vmatprep.subr.mxu0 %v64
    %119 = vmatpush1.msra.mxu0 %v63
    %120 = vmatprep.subr.mxu0 %v68
    %121 = vmatpush1.msra.mxu0 %v67
    %122 = vmatprep.subr.mxu0 %v72
    %123 = vmatpush1.msra.mxu0 %v71
    %124 = vmatprep.subr.mxu0 %v76
    %125 = vmatpush1.msra.mxu0 %v75
    %126 = vmatprep.subr.mxu0 %v80
    %127 = vmatpush1.msra.mxu0 %v79
    %128 = vmatprep.subr.mxu0 %v84
    %129 = vmatpush1.msra.mxu0 %v83
    %130 = vmatprep.subr.mxu0 0.0
    %131 = vmatpush1.msra.mxu0 0.0
    %132 = vmatprep.subr.mxu0 0.0
    %133 = vmatpush1.msra.mxu0 0.0
    %134 = vmatprep.subr.mxu0 0.0
    %135 = vmatpush1.msra.mxu0 0.0
    %136 = vmatprep.subr.mxu0 0.0
    %137 = vmatpush1.msra.mxu0 0.0
    %138 = vmatprep.subr.mxu0 0.0
    %139 = vmatpush1.msra.mxu0 0.0
    %140 = vmatprep.subr.mxu0 0.0
    %141 = vmatpush1.msra.mxu0 0.0
    %142 = vmatprep.subr.mxu0 0.0
    %143 = vmatpush1.msra.mxu0 0.0
    %144 = vmatprep.subr.mxu0 0.0
    %145 = vmatpush1.msra.mxu0 0.0
    %146 = vmatprep.subr.mxu0 0.0
    %147 = vmatpush1.msra.mxu0 0.0
    %148 = vmatprep.subr.mxu0 0.0
    %149 = vmatpush1.msra.mxu0 0.0
    %150 = vmatprep.subr.mxu0 0.0
    %151 = vmatpush1.msra.mxu0 0.0
    %152 = vmatprep.subr.mxu0 0.0
    %153 = vmatpush1.msra.mxu0 0.0
    %154 = vmatprep.subr.mxu0 0.0
    %155 = vmatpush1.msra.mxu0 0.0
    %156 = vmatprep.subr.mxu0 0.0
    %157 = vmatpush1.msra.mxu0 0.0
    %158 = vmatprep.subr.mxu0 0.0
    %159 = vmatpush1.msra.mxu0 0.0
    %160 = vmatprep.subr.mxu0 0.0
    %161 = vmatpush1.msra.mxu0 0.0
    %162 = vmatprep.subr.mxu0 0.0
    %163 = vmatpush1.msra.mxu0 0.0
    %164 = vmatprep.subr.mxu0 0.0
    %165 = vmatpush1.msra.mxu0 0.0
    %166 = vmatprep.subr.mxu0 0.0
    %167 = vmatpush1.msra.mxu0 0.0
    %168 = vmatprep.subr.mxu0 0.0
    %169 = vmatpush1.msra.mxu0 0.0
    %170 = vmatprep.subr.mxu0 0.0
    %171 = vmatpush1.msra.mxu0 0.0
    %172 = vmatprep.subr.mxu0 0.0
    %173 = vmatpush1.msra.mxu0 0.0
    %174 = vmatprep.subr.mxu0 0.0
    %175 = vmatpush1.msra.mxu0 0.0
    %176 = vmatprep.subr.mxu0 0.0
    %177 = vmatpush1.msra.mxu0 0.0
    %178 = vmatprep.mubr.f32.mxu0 0.0
    %179 = vmatmul.mubr.f32.gmra.mrb[0].mxu0 %v112
    %v180 = vpop.f32.mrb[0].mxu0
    %v181 = vadd.f32 %v93, %v180
    %v182 = vpop.f32.mrb[0].mxu0
    %v183 = vadd.f32 %v97, %v182
    %184 = vdwg.mxu0
    %185 = vmatprep.subr.mxu0 %v58
    %186 = vmatpush1.msra.mxu0 %v57
    %187 = vmatprep.subr.mxu0 %v62
    %188 = vmatpush1.msra.mxu0 %v61
    %189 = vmatprep.subr.mxu0 %v66
    %190 = vmatpush1.msra.mxu0 %v65
    %191 = vmatprep.subr.mxu0 %v70
    %192 = vmatpush1.msra.mxu0 %v69
    %193 = vmatprep.subr.mxu0 %v74
    %194 = vmatpush1.msra.mxu0 %v73
    %195 = vmatprep.subr.mxu0 %v78
    %196 = vmatpush1.msra.mxu0 %v77
    %197 = vmatprep.subr.mxu0 %v82
    %198 = vmatpush1.msra.mxu0 %v81
    %199 = vmatprep.subr.mxu0 %v86
    %200 = vmatpush1.msra.mxu0 %v85
    %201 = vmatprep.subr.mxu0 0.0
    %202 = vmatpush1.msra.mxu0 0.0
    %203 = vmatprep.subr.mxu0 0.0
    %204 = vmatpush1.msra.mxu0 0.0
    %205 = vmatprep.subr.mxu0 0.0
    %206 = vmatpush1.msra.mxu0 0.0
    %207 = vmatprep.subr.mxu0 0.0
    %208 = vmatpush1.msra.mxu0 0.0
    %209 = vmatprep.subr.mxu0 0.0
    %210 = vmatpush1.msra.mxu0 0.0
    %211 = vmatprep.subr.mxu0 0.0
    %212 = vmatpush1.msra.mxu0 0.0
    %213 = vmatprep.subr.mxu0 0.0
    %214 = vmatpush1.msra.mxu0 0.0
    %215 = vmatprep.subr.mxu0 0.0
    %216 = vmatpush1.msra.mxu0 0.0
    %217 = vmatprep.subr.mxu0 0.0
    %218 = vmatpush1.msra.mxu0 0.0
    %219 = vmatprep.subr.mxu0 0.0
    %220 = vmatpush1.msra.mxu0 0.0
    %221 = vmatprep.subr.mxu0 0.0
    %222 = vmatpush1.msra.mxu0 0.0
    %223 = vmatprep.subr.mxu0 0.0
    %224 = vmatpush1.msra.mxu0 0.0
    %225 = vmatprep.subr.mxu0 0.0
    %226 = vmatpush1.msra.mxu0 0.0
    %227 = vmatprep.subr.mxu0 0.0
    %228 = vmatpush1.msra.mxu0 0.0
    %229 = vmatprep.subr.mxu0 0.0
    %230 = vmatpush1.msra.mxu0 0.0
    %231 = vmatprep.subr.mxu0 0.0
    %232 = vmatpush1.msra.mxu0 0.0
    %233 = vmatprep.subr.mxu0 0.0
    %234 = vmatpush1.msra.mxu0 0.0
    %235 = vmatprep.subr.mxu0 0.0
    %236 = vmatpush1.msra.mxu0 0.0
    %237 = vmatprep.subr.mxu0 0.0
    %238 = vmatpush1.msra.mxu0 0.0
    %239 = vmatprep.subr.mxu0 0.0
    %240 = vmatpush1.msra.mxu0 0.0
    %241 = vmatprep.subr.mxu0 0.0
    %242 = vmatpush1.msra.mxu0 0.0
    %243 = vmatprep.subr.mxu0 0.0
    %244 = vmatpush1.msra.mxu0 0.0
    %245 = vmatprep.subr.mxu0 0.0
    %246 = vmatpush1.msra.mxu0 0.0
    %247 = vmatprep.subr.mxu0 0.0
    %248 = vmatpush1.msra.mxu0 0.0
    %249 = vmatprep.mubr.f32.mxu0 0.0
    %250 = vmatmul.mubr.f32.gmra.mrb[0].mxu0 %v112
    %v251 = vpop.f32.mrb[0].mxu0
    %v252 = vadd.f32 %v101, %v251
    %v253 = vpop.f32.mrb[0].mxu0
    %v254 = vadd.f32 %v105, %v253
    %255 = vdwg.mxu0
    %v256 = vmax.f32 %v181, 0.0
    %v257 = vmax.f32 %v183, 0.0
    %v258 = vmax.f32 %v252, 0.0
    %v259 = vmax.f32 %v254, 0.0
    %v260 = vld [vmem:[#allocation7] sm:$0xff]
    %v261 = vld [vmem:[#allocation7 + $0x8] sm:$0xff]
    %v262 = vld [vmem:[#allocation7 + $0x10] sm:$0xff]
    %v263 = vld [vmem:[#allocation7 + $0x18] sm:$0xff]
    %v264 = vld [vmem:[#allocation7 + $0x20] sm:$0xff]
    %v265 = vld [vmem:[#allocation7 + $0x28] sm:$0xff]
    %v266 = vld [vmem:[#allocation7 + $0x30] sm:$0xff]
    %v267 = vld [vmem:[#allocation7 + $0x38] sm:$0xff]
    %v268 = vld [vmem:[#allocation7 + $0x40] sm:$0xff]
    %v269 = vld [vmem:[#allocation7 + $0x48] sm:$0xff]
    %v270 = vld [vmem:[#allocation7 + $0x50] sm:$0xff]
    %v271 = vld [vmem:[#allocation7 + $0x58] sm:$0xff]
    %v272 = vld [vmem:[#allocation7 + $0x60] sm:$0xff]
    %v273 = vld [vmem:[#allocation7 + $0x68] sm:$0xff]
    %v274 = vld [vmem:[#allocation7 + $0x70] sm:$0xff]
    %v275 = vld [vmem:[#allocation7 + $0x78] sm:$0xff]
    %v276 = vld [vmem:[#allocation7 + $0x80] sm:$0xff]
    %v277 = vld [vmem:[#allocation7 + $0x88] sm:$0xff]
    %v278 = vld [vmem:[#allocation7 + $0x90] sm:$0xff]
    %v279 = vld [vmem:[#allocation7 + $0x98] sm:$0xff]
    %v280 = vld [vmem:[#allocation7 + $0xa0] sm:$0xff]
    %v281 = vld [vmem:[#allocation7 + $0xa8] sm:$0xff]
    %v282 = vld [vmem:[#allocation7 + $0xb0] sm:$0xff]
    %v283 = vld [vmem:[#allocation7 + $0xb8] sm:$0xff]
    %v284 = vld [vmem:[#allocation7 + $0xc0] sm:$0xff]
    %v285 = vld [vmem:[#allocation7 + $0xc8] sm:$0xff]
    %v286 = vld [vmem:[#allocation7 + $0xd0] sm:$0xff]
    %v287 = vld [vmem:[#allocation7 + $0xd8] sm:$0xff]
    %v288 = vld [vmem:[#allocation7 + $0xe0] sm:$0xff]
    %v289 = vld [vmem:[#allocation7 + $0xe8] sm:$0xff]
    %v290 = vld [vmem:[#allocation7 + $0xf0] sm:$0xff]
    %v291 = vld [vmem:[#allocation7 + $0xf8] sm:$0xff]
    %v292 = vld [vmem:[#allocation7 + $0x100] sm:$0xff]
    %v293 = vld [vmem:[#allocation7 + $0x108] sm:$0xff]
    %v294 = vld [vmem:[#allocation7 + $0x110] sm:$0xff]
    %v295 = vld [vmem:[#allocation7 + $0x118] sm:$0xff]
    %v296 = vld [vmem:[#allocation7 + $0x120] sm:$0xff]
    %v297 = vld [vmem:[#allocation7 + $0x128] sm:$0xff]
    %v298 = vld [vmem:[#allocation7 + $0x130] sm:$0xff]
    %v299 = vld [vmem:[#allocation7 + $0x138] sm:$0xff]
    %v300 = vld [vmem:[#allocation7 + $0x140] sm:$0xff]
    %v301 = vld [vmem:[#allocation7 + $0x148] sm:$0xff]
    %v302 = vld [vmem:[#allocation7 + $0x150] sm:$0xff]
    %v303 = vld [vmem:[#allocation7 + $0x158] sm:$0xff]
    %v304 = vld [vmem:[#allocation7 + $0x160] sm:$0xff]
    %v305 = vld [vmem:[#allocation7 + $0x168] sm:$0xff]
    %v306 = vld [vmem:[#allocation7 + $0x170] sm:$0xff]
    %v307 = vld [vmem:[#allocation7 + $0x178] sm:$0xff]
    %v308 = vld [vmem:[#allocation7 + $0x180] sm:$0xff]
    %v309 = vld [vmem:[#allocation7 + $0x188] sm:$0xff]
    %v310 = vld [vmem:[#allocation7 + $0x190] sm:$0xff]
    %v311 = vld [vmem:[#allocation7 + $0x198] sm:$0xff]
    %v312 = vld [vmem:[#allocation7 + $0x1a0] sm:$0xff]
    %v313 = vld [vmem:[#allocation7 + $0x1a8] sm:$0xff]
    %v314 = vld [vmem:[#allocation7 + $0x1b0] sm:$0xff]
    %v315 = vld [vmem:[#allocation7 + $0x1b8] sm:$0xff]
    %v316 = vld [vmem:[#allocation7 + $0x1c0] sm:$0xff]
    %v317 = vld [vmem:[#allocation7 + $0x1c8] sm:$0xff]
    %v318 = vld [vmem:[#allocation7 + $0x1d0] sm:$0xff]
    %v319 = vld [vmem:[#allocation7 + $0x1d8] sm:$0xff]
    %v320 = vld [vmem:[#allocation7 + $0x1e0] sm:$0xff]
    %v321 = vld [vmem:[#allocation7 + $0x1e8] sm:$0xff]
    %v322 = vld [vmem:[#allocation7 + $0x1f0] sm:$0xff]
    %v323 = vld [vmem:[#allocation7 + $0x1f8] sm:$0xff]
    %v324 = vld [vmem:[#allocation7 + $0x200] sm:$0x1]
    %v325 = vlaneseq
    %v326 = vshrl.u32 %v325, 7
    %v327 = vsub.s32 0, %v326
    %v328 = vrot.slane %v324, %v327
    %329 = vmatprep.subr.mxu0 0.0
    %330 = vmatpush1.msra.mxu0 %v260
    %331 = vmatprep.subr.mxu0 0.0
    %332 = vmatpush1.msra.mxu0 %v261
    %333 = vmatprep.subr.mxu0 0.0
    %334 = vmatpush1.msra.mxu0 %v262
    %335 = vmatprep.subr.mxu0 0.0
    %336 = vmatpush1.msra.mxu0 %v263
    %337 = vmatprep.subr.mxu0 0.0
    %338 = vmatpush1.msra.mxu0 %v264
    %339 = vmatprep.subr.mxu0 0.0
    %340 = vmatpush1.msra.mxu0 %v265
    %341 = vmatprep.subr.mxu0 0.0
    %342 = vmatpush1.msra.mxu0 %v266
    %343 = vmatprep.subr.mxu0 0.0
    %344 = vmatpush1.msra.mxu0 %v267
    %345 = vmatprep.subr.mxu0 0.0
    %346 = vmatpush1.msra.mxu0 %v268
    %347 = vmatprep.subr.mxu0 0.0
    %348 = vmatpush1.msra.mxu0 %v269
    %349 = vmatprep.subr.mxu0 0.0
    %350 = vmatpush1.msra.mxu0 %v270
    %351 = vmatprep.subr.mxu0 0.0
    %352 = vmatpush1.msra.mxu0 %v271
    %353 = vmatprep.subr.mxu0 0.0
    %354 = vmatpush1.msra.mxu0 %v272
    %355 = vmatprep.subr.mxu0 0.0
    %356 = vmatpush1.msra.mxu0 %v273
    %357 = vmatprep.subr.mxu0 0.0
    %358 = vmatpush1.msra.mxu0 %v274
    %359 = vmatprep.subr.mxu0 0.0
    %360 = vmatpush1.msra.mxu0 %v275
    %361 = vmatprep.subr.mxu0 0.0
    %362 = vmatpush1.msra.mxu0 %v276
    %363 = vmatprep.subr.mxu0 0.0
    %364 = vmatpush1.msra.mxu0 %v277
    %365 = vmatprep.subr.mxu0 0.0
    %366 = vmatpush1.msra.mxu0 %v278
    %367 = vmatprep.subr.mxu0 0.0
    %368 = vmatpush1.msra.mxu0 %v279
    %369 = vmatprep.subr.mxu0 0.0
    %370 = vmatpush1.msra.mxu0 %v280
    %371 = vmatprep.subr.mxu0 0.0
    %372 = vmatpush1.msra.mxu0 %v281
    %373 = vmatprep.subr.mxu0 0.0
    %374 = vmatpush1.msra.mxu0 %v282
    %375 = vmatprep.subr.mxu0 0.0
    %376 = vmatpush1.msra.mxu0 %v283
    %377 = vmatprep.subr.mxu0 0.0
    %378 = vmatpush1.msra.mxu0 %v284
    %379 = vmatprep.subr.mxu0 0.0
    %380 = vmatpush1.msra.mxu0 %v285
    %381 = vmatprep.subr.mxu0 0.0
    %382 = vmatpush1.msra.mxu0 %v286
    %383 = vmatprep.subr.mxu0 0.0
    %384 = vmatpush1.msra.mxu0 %v287
    %385 = vmatprep.subr.mxu0 0.0
    %386 = vmatpush1.msra.mxu0 %v288
    %387 = vmatprep.subr.mxu0 0.0
    %388 = vmatpush1.msra.mxu0 %v289
    %389 = vmatprep.subr.mxu0 0.0
    %390 = vmatpush1.msra.mxu0 %v290
    %391 = vmatprep.subr.mxu0 0.0
    %392 = vmatpush1.msra.mxu0 %v291
    %393 = vmatprep.mubr.f32.mxu0 %v257
    %394 = vmatmul.mubr.f32.gmra.mrb[0].mxu0 %v256
    %v395 = vpop.f32.mrb[0].mxu0
    %v396 = vadd.f32 %v328, %v395
    %v397 = vpop.f32.mrb[0].mxu0
    %398 = vdwg.mxu0
    %399 = vmatprep.subr.mxu0 0.0
    %400 = vmatpush1.msra.mxu0 %v292
    %401 = vmatprep.subr.mxu0 0.0
    %402 = vmatpush1.msra.mxu0 %v293
    %403 = vmatprep.subr.mxu0 0.0
    %404 = vmatpush1.msra.mxu0 %v294
    %405 = vmatprep.subr.mxu0 0.0
    %406 = vmatpush1.msra.mxu0 %v295
    %407 = vmatprep.subr.mxu0 0.0
    %408 = vmatpush1.msra.mxu0 %v296
    %409 = vmatprep.subr.mxu0 0.0
    %410 = vmatpush1.msra.mxu0 %v297
    %411 = vmatprep.subr.mxu0 0.0
    %412 = vmatpush1.msra.mxu0 %v298
    %413 = vmatprep.subr.mxu0 0.0
    %414 = vmatpush1.msra.mxu0 %v299
    %415 = vmatprep.subr.mxu0 0.0
    %416 = vmatpush1.msra.mxu0 %v300
    %417 = vmatprep.subr.mxu0 0.0
    %418 = vmatpush1.msra.mxu0 %v301
    %419 = vmatprep.subr.mxu0 0.0
    %420 = vmatpush1.msra.mxu0 %v302
    %421 = vmatprep.subr.mxu0 0.0
    %422 = vmatpush1.msra.mxu0 %v303
    %423 = vmatprep.subr.mxu0 0.0
    %424 = vmatpush1.msra.mxu0 %v304
    %425 = vmatprep.subr.mxu0 0.0
    %426 = vmatpush1.msra.mxu0 %v305
    %427 = vmatprep.subr.mxu0 0.0
    %428 = vmatpush1.msra.mxu0 %v306
    %429 = vmatprep.subr.mxu0 0.0
    %430 = vmatpush1.msra.mxu0 %v307
    %431 = vmatprep.subr.mxu0 0.0
    %432 = vmatpush1.msra.mxu0 %v308
    %433 = vmatprep.subr.mxu0 0.0
    %434 = vmatpush1.msra.mxu0 %v309
    %435 = vmatprep.subr.mxu0 0.0
    %436 = vmatpush1.msra.mxu0 %v310
    %437 = vmatprep.subr.mxu0 0.0
    %438 = vmatpush1.msra.mxu0 %v311
    %439 = vmatprep.subr.mxu0 0.0
    %440 = vmatpush1.msra.mxu0 %v312
    %441 = vmatprep.subr.mxu0 0.0
    %442 = vmatpush1.msra.mxu0 %v313
    %443 = vmatprep.subr.mxu0 0.0
    %444 = vmatpush1.msra.mxu0 %v314
    %445 = vmatprep.subr.mxu0 0.0
    %446 = vmatpush1.msra.mxu0 %v315
    %447 = vmatprep.subr.mxu0 0.0
    %448 = vmatpush1.msra.mxu0 %v316
    %449 = vmatprep.subr.mxu0 0.0
    %450 = vmatpush1.msra.mxu0 %v317
    %451 = vmatprep.subr.mxu0 0.0
    %452 = vmatpush1.msra.mxu0 %v318
    %453 = vmatprep.subr.mxu0 0.0
    %454 = vmatpush1.msra.mxu0 %v319
    %455 = vmatprep.subr.mxu0 0.0
    %456 = vmatpush1.msra.mxu0 %v320
    %457 = vmatprep.subr.mxu0 0.0
    %458 = vmatpush1.msra.mxu0 %v321
    %459 = vmatprep.subr.mxu0 0.0
    %460 = vmatpush1.msra.mxu0 %v322
    %461 = vmatprep.subr.mxu0 0.0
    %462 = vmatpush1.msra.mxu0 %v323
    %463 = vmatprep.mubr.f32.mxu0 %v259
    %464 = vmatmul.mubr.f32.gmra.mrb[0].mxu0 %v258
    %v465 = vpop.f32.mrb[0].mxu0
    %v466 = vadd.f32 %v396, %v465
    %v467 = vpop.f32.mrb[0].mxu0
    %468 = vdwg.mxu0
    %v469 = vmax.f32 %v466, 0.0
    %v470 = vld [vmem:[#allocation7 + $0x208] sm:$0xff]
    %v471 = vld [vmem:[#allocation7 + $0x210] sm:$0xff]
    %v472 = vld [vmem:[#allocation7 + $0x218] sm:$0xff]
    %v473 = vld [vmem:[#allocation7 + $0x220] sm:$0xff]
    %v474 = vld [vmem:[#allocation7 + $0x228] sm:$0xff]
    %v475 = vld [vmem:[#allocation7 + $0x230] sm:$0xff]
    %v476 = vld [vmem:[#allocation7 + $0x238] sm:$0xff]
    %v477 = vld [vmem:[#allocation7 + $0x240] sm:$0xff]
    %v478 = vld [vmem:[#allocation7 + $0x248] sm:$0xff]
    %v479 = vld [vmem:[#allocation7 + $0x250] sm:$0xff]
    %v480 = vld [vmem:[#allocation7 + $0x258] sm:$0xff]
    %v481 = vld [vmem:[#allocation7 + $0x260] sm:$0xff]
    %v482 = vld [vmem:[#allocation7 + $0x268] sm:$0xff]
    %v483 = vld [vmem:[#allocation7 + $0x270] sm:$0xff]
    %v484 = vld [vmem:[#allocation7 + $0x278] sm:$0xff]
    %v485 = vld [vmem:[#allocation7 + $0x280] sm:$0xff]
    %v486 = vld [vmem:[#allocation7 + $0x288] sm:$0x1]
    %v487 = vlaneseq
    %v488 = vshrl.u32 %v487, 7
    %v489 = vsub.s32 0, %v488
    %v490 = vrot.slane %v486, %v489
    %491 = vmatprep.subr.mxu0 0.0
    %492 = vmatpush1.msra.mxu0 %v470
    %493 = vmatprep.subr.mxu0 0.0
    %494 = vmatpush1.msra.mxu0 %v471
    %495 = vmatprep.subr.mxu0 0.0
    %496 = vmatpush1.msra.mxu0 %v472
    %497 = vmatprep.subr.mxu0 0.0
    %498 = vmatpush1.msra.mxu0 %v473
    %499 = vmatprep.subr.mxu0 0.0
    %500 = vmatpush1.msra.mxu0 %v474
    %501 = vmatprep.subr.mxu0 0.0
    %502 = vmatpush1.msra.mxu0 %v475
    %503 = vmatprep.subr.mxu0 0.0
    %504 = vmatpush1.msra.mxu0 %v476
    %505 = vmatprep.subr.mxu0 0.0
    %506 = vmatpush1.msra.mxu0 %v477
    %507 = vmatprep.subr.mxu0 0.0
    %508 = vmatpush1.msra.mxu0 %v478
    %509 = vmatprep.subr.mxu0 0.0
    %510 = vmatpush1.msra.mxu0 %v479
    %511 = vmatprep.subr.mxu0 0.0
    %512 = vmatpush1.msra.mxu0 %v480
    %513 = vmatprep.subr.mxu0 0.0
    %514 = vmatpush1.msra.mxu0 %v481
    %515 = vmatprep.subr.mxu0 0.0
    %516 = vmatpush1.msra.mxu0 %v482
    %517 = vmatprep.subr.mxu0 0.0
    %518 = vmatpush1.msra.mxu0 %v483
    %519 = vmatprep.subr.mxu0 0.0
    %520 = vmatpush1.msra.mxu0 %v484
    %521 = vmatprep.subr.mxu0 0.0
    %522 = vmatpush1.msra.mxu0 %v485
    %523 = vmatprep.subr.mxu0 0.0
    %524 = vmatpush1.msra.mxu0 0.0
    %525 = vmatprep.subr.mxu0 0.0
    %526 = vmatpush1.msra.mxu0 0.0
    %527 = vmatprep.subr.mxu0 0.0
    %528 = vmatpush1.msra.mxu0 0.0
    %529 = vmatprep.subr.mxu0 0.0
    %530 = vmatpush1.msra.mxu0 0.0
    %531 = vmatprep.subr.mxu0 0.0
    %532 = vmatpush1.msra.mxu0 0.0
    %533 = vmatprep.subr.mxu0 0.0
    %534 = vmatpush1.msra.mxu0 0.0
    %535 = vmatprep.subr.mxu0 0.0
    %536 = vmatpush1.msra.mxu0 0.0
    %537 = vmatprep.subr.mxu0 0.0
    %538 = vmatpush1.msra.mxu0 0.0
    %539 = vmatprep.subr.mxu0 0.0
    %540 = vmatpush1.msra.mxu0 0.0
    %541 = vmatprep.subr.mxu0 0.0
    %542 = vmatpush1.msra.mxu0 0.0
    %543 = vmatprep.subr.mxu0 0.0
    %544 = vmatpush1.msra.mxu0 0.0
    %545 = vmatprep.subr.mxu0 0.0
    %546 = vmatpush1.msra.mxu0 0.0
    %547 = vmatprep.subr.mxu0 0.0
    %548 = vmatpush1.msra.mxu0 0.0
    %549 = vmatprep.subr.mxu0 0.0
    %550 = vmatpush1.msra.mxu0 0.0
    %551 = vmatprep.subr.mxu0 0.0
    %552 = vmatpush1.msra.mxu0 0.0
    %553 = vmatprep.subr.mxu0 0.0
    %554 = vmatpush1.msra.mxu0 0.0
    %555 = vmatprep.mubr.f32.mxu0 0.0
    %556 = vmatmul.mubr.f32.gmra.mrb[0].mxu0 %v469
    %v557 = vpop.f32.mrb[0].mxu0
    %v558 = vadd.f32 %v490, %v557
    %v559 = vpop.f32.mrb[0].mxu0
    %560 = vdwg.mxu0
    %v561 = vmax.f32 %v558, 0.0
    %v562 = vld [vmem:[#allocation7 + $0x290] sm:$0xff]
    %v563 = vld [vmem:[#allocation7 + $0x298] sm:$0xff]
    %v564 = vld [vmem:[#allocation7 + $0x2a0] sm:$0xff]
    %v565 = vld [vmem:[#allocation7 + $0x2a8] sm:$0xff]
    %v566 = vld [vmem:[#allocation7 + $0x2b0] sm:$0xff]
    %v567 = vld [vmem:[#allocation7 + $0x2b8] sm:$0xff]
    %v568 = vld [vmem:[#allocation7 + $0x2c0] sm:$0xff]
    %v569 = vld [vmem:[#allocation7 + $0x2c8] sm:$0xff]
    %v570 = vld [vmem:[#allocation7 + $0x2d0] sm:$0xff]
    %v571 = vld [vmem:[#allocation7 + $0x2d8] sm:$0xff]
    %v572 = vld [vmem:[#allocation7 + $0x2e0] sm:$0xff]
    %v573 = vld [vmem:[#allocation7 + $0x2e8] sm:$0xff]
    %v574 = vld [vmem:[#allocation7 + $0x2f0] sm:$0xff]
    %v575 = vld [vmem:[#allocation7 + $0x2f8] sm:$0xff]
    %v576 = vld [vmem:[#allocation7 + $0x300] sm:$0xff]
    %v577 = vld [vmem:[#allocation7 + $0x308] sm:$0xff]
    %v578 = vld [vmem:[#allocation7 + $0x310] sm:$0x1]
    %v579 = vlaneseq
    %v580 = vshrl.u32 %v579, 7
    %v581 = vsub.s32 0, %v580
    %v582 = vrot.slane %v578, %v581
    %583 = vmatprep.subr.mxu0 0.0
    %584 = vmatpush1.msra.mxu0 %v562
    %585 = vmatprep.subr.mxu0 0.0
    %586 = vmatpush1.msra.mxu0 %v563
    %587 = vmatprep.subr.mxu0 0.0
    %588 = vmatpush1.msra.mxu0 %v564
    %589 = vmatprep.subr.mxu0 0.0
    %590 = vmatpush1.msra.mxu0 %v565
    %591 = vmatprep.subr.mxu0 0.0
    %592 = vmatpush1.msra.mxu0 %v566
    %593 = vmatprep.subr.mxu0 0.0
    %594 = vmatpush1.msra.mxu0 %v567
    %595 = vmatprep.subr.mxu0 0.0
    %596 = vmatpush1.msra.mxu0 %v568
    %597 = vmatprep.subr.mxu0 0.0
    %598 = vmatpush1.msra.mxu0 %v569
    %599 = vmatprep.subr.mxu0 0.0
    %600 = vmatpush1.msra.mxu0 %v570
    %601 = vmatprep.subr.mxu0 0.0
    %602 = vmatpush1.msra.mxu0 %v571
    %603 = vmatprep.subr.mxu0 0.0
    %604 = vmatpush1.msra.mxu0 %v572
    %605 = vmatprep.subr.mxu0 0.0
    %606 = vmatpush1.msra.mxu0 %v573
    %607 = vmatprep.subr.mxu0 0.0
    %608 = vmatpush1.msra.mxu0 %v574
    %609 = vmatprep.subr.mxu0 0.0
    %610 = vmatpush1.msra.mxu0 %v575
    %611 = vmatprep.subr.mxu0 0.0
    %612 = vmatpush1.msra.mxu0 %v576
    %613 = vmatprep.subr.mxu0 0.0
    %614 = vmatpush1.msra.mxu0 %v577
    %615 = vmatprep.subr.mxu0 0.0
    %616 = vmatpush1.msra.mxu0 0.0
    %617 = vmatprep.subr.mxu0 0.0
    %618 = vmatpush1.msra.mxu0 0.0
    %619 = vmatprep.subr.mxu0 0.0
    %620 = vmatpush1.msra.mxu0 0.0
    %621 = vmatprep.subr.mxu0 0.0
    %622 = vmatpush1.msra.mxu0 0.0
    %623 = vmatprep.subr.mxu0 0.0
    %624 = vmatpush1.msra.mxu0 0.0
    %625 = vmatprep.subr.mxu0 0.0
    %626 = vmatpush1.msra.mxu0 0.0
    %627 = vmatprep.subr.mxu0 0.0
    %628 = vmatpush1.msra.mxu0 0.0
    %629 = vmatprep.subr.mxu0 0.0
    %630 = vmatpush1.msra.mxu0 0.0
    %631 = vmatprep.subr.mxu0 0.0
    %632 = vmatpush1.msra.mxu0 0.0
    %633 = vmatprep.subr.mxu0 0.0
    %634 = vmatpush1.msra.mxu0 0.0
    %635 = vmatprep.subr.mxu0 0.0
    %636 = vmatpush1.msra.mxu0 0.0
    %637 = vmatprep.subr.mxu0 0.0
    %638 = vmatpush1.msra.mxu0 0.0
    %639 = vmatprep.subr.mxu0 0.0
    %640 = vmatpush1.msra.mxu0 0.0
    %641 = vmatprep.subr.mxu0 0.0
    %642 = vmatpush1.msra.mxu0 0.0
    %643 = vmatprep.subr.mxu0 0.0
    %644 = vmatpush1.msra.mxu0 0.0
    %645 = vmatprep.subr.mxu0 0.0
    %646 = vmatpush1.msra.mxu0 0.0
    %647 = vmatprep.mubr.f32.mxu0 0.0
    %648 = vmatmul.mubr.f32.gmra.mrb[0].mxu0 %v561
    %v649 = vpop.f32.mrb[0].mxu0
    %v650 = vadd.f32 %v582, %v649
    %v651 = vpop.f32.mrb[0].mxu0
    %652 = vdwg.mxu0
    %653 = vst [vmem:[#allocation8] sm:$0xff] %v650
    // Predicated region
    $region26: #{tpu_custom_call.1} parent=1 // pred_check
      _
    $region27: #{tpu_custom_call.1} parent=1 // pred_check_branch
      %655 = sbr.rel (0) target = $region29
    $region28: #{tpu_custom_call.1} parent=1 // pred_region
      %s657 = ssub.s32 128, 128
      %658 = vsyncadd [#allocation4], %s657
      %s660 = sshll.u32 [#allocation8], 4
      %s661 = int_to_ptr.vmem [resolvable:$true] %s660
      %663 = dma.vmem_to_hbm [thread:$0]  %s661, 128, %s3, [#allocation4]
    $region29: #{tpu_custom_call.1} parent=1 // pred_fallthru
      _
    // Predicated region
    $region30: #{tpu_custom_call.1} parent=1 // pred_check
      _
    $region31: #{tpu_custom_call.1} parent=1 // pred_check_branch
      %665 = sbr.rel (0) target = $region33
    $region32: #{tpu_custom_call.1} parent=1 // pred_region
      %666 = dma.done [#allocation4], 128
    $region33: #{tpu_custom_call.1} parent=1 // pred_fallthru
      _
    %667 = vsyncpa [#allocation3], 1
    %668 = vsyncpa [#allocation6], 1
    %669 = vsyncpa [#allocation4], 1

</llo_original>
